<compile_context>
chip_gen: v5e
topology: v5e:2x2
jax: 0.10.0
libtpu: 0.0.40
codegen_flags: <defaults>
</compile_context>

<pallas_src>
import math

import jax
import jax.numpy as jnp
from jax.experimental import pallas as pl
from jax.experimental.pallas import tpu as pltpu


def _gather_kernel(idx_ref, table_ref, out_ref):
    """Gather T rows of the embedding table via a one-hot MXU matmul.

    idx_ref:   (T, 1) int32 — embedding indices (column vector), in VMEM.
    table_ref: (M, E)       — full embedding table, in VMEM.
    out_ref:   (T, E)       — gathered rows.
    """
    T = idx_ref.shape[0]
    M = table_ref.shape[0]

    iota = jax.lax.broadcasted_iota(jnp.int32, (T, M), 1)        # (T, M)
    onehot = (iota == idx_ref[...]).astype(table_ref.dtype)      # (T, M)
    gathered = jnp.dot(onehot, table_ref[...],
                       preferred_element_type=jnp.float32)       # (T, E) f32
    # Cast once, on the small tile (never per broadcast element).
    out_ref[...] = gathered.astype(out_ref.dtype)


def _broadcast_rows_kernel(row_ref, out_ref):
    """Pure-store broadcast of one lane-dense row over a batch tile.

    row_ref: (1, T*E)      — gathered features, flattened lane-dense.
    out_ref: (b_tile, T*E) — this block's slice of the materialized output.
    """
    out_ref[...] = jnp.broadcast_to(row_ref[...], out_ref.shape)


def embedding_feature_layer(x, embedding_table, x_index=None,
                            materialize_batch=False):
    """Pallas equivalent of EmbeddingFeature_Layer.forward.

    x:               (*batch_shape, T)   — only the shape is used.
    embedding_table: (max_embedding, E)  — nn.Embedding weight.
    x_index:         optional (T,) int indices; defaults to arange(T).
                     Contract: values must lie in [0, max_embedding).
    materialize_batch: if True, materialize the (B, T, E) broadcast with a
                     lane-dense tiled Pallas store kernel; default mirrors
                     PyTorch's non-materialized .expand() via broadcast_to.

    Returns: (*batch_shape, T, E)
    """
    *batch_shape, T = x.shape
    M, E = embedding_table.shape

    if x_index is None:
        x_index = jnp.arange(T, dtype=jnp.int32)
    x_index = x_index.astype(jnp.int32).reshape(T)
    idx2d = x_index.reshape(T, 1)

    # --- Kernel 1: the gather (the only real compute), single grid step. ---
    gathered = pl.pallas_call(
        _gather_kernel,
        grid=(1,),
        in_specs=[
            pl.BlockSpec((T, 1), lambda i: (0, 0)),    # indices, resident
            pl.BlockSpec((M, E), lambda i: (0, 0)),    # full table, resident
        ],
        out_specs=pl.BlockSpec((T, E), lambda i: (0, 0)),
        out_shape=jax.ShapeDtypeStruct((T, E), embedding_table.dtype),
        cost_estimate=pl.CostEstimate(
            flops=2 * T * M * E,
            transcendentals=0,
            bytes_accessed=T * 4 + M * E * 4 + T * E * 4),
    )(idx2d, embedding_table)

    if not materialize_batch:
        # Mirror PyTorch's .expand(): non-materialized broadcast (XLA keeps
        # this lazy / fuses it into consumers under jit).
        view_shape = (1,) * len(batch_shape) + (T, E)
        return jnp.broadcast_to(gathered.reshape(view_shape),
                                (*batch_shape, T, E))

    # --- Optional Kernel 2: materialized, lane-dense batch broadcast. ---
    B_flat = math.prod(batch_shape) if batch_shape else 1
    TE = T * E
    row = gathered.reshape(1, TE)            # row-major flatten, zero-cost

    # Bounded tiles: keep double-buffered output block ~<= 2 MiB so it fits
    # comfortably under v7x's 32 MiB scoped-VMEM default (and v5e/v6e's).
    bytes_per_row = TE * row.dtype.itemsize
    target_rows = max(8, (2 * 1024 * 1024) // max(1, 2 * bytes_per_row))
    if B_flat <= target_rows:
        b_tile = B_flat                       # single step; no grid overhead
    else:
        b_tile = max(8, (target_rows // 8) * 8)   # sublane-aligned tile
    grid_b = pl.cdiv(B_flat, b_tile)

    out = pl.pallas_call(
        _broadcast_rows_kernel,
        grid=(grid_b,),
        in_specs=[pl.BlockSpec((1, TE), lambda i: (0, 0))],       # resident
        out_specs=pl.BlockSpec((b_tile, TE), lambda i: (i, 0)),   # lane-dense
        out_shape=jax.ShapeDtypeStruct((B_flat, TE), row.dtype),
        compiler_params=pltpu.CompilerParams(
            dimension_semantics=("parallel",)),   # megacore on v7x; no-op 1-TC
        cost_estimate=pl.CostEstimate(
            flops=0, transcendentals=0,
            bytes_accessed=TE * 4 + B_flat * TE * 4),
    )(row)

    return out.reshape(*batch_shape, T, E)


def _reference_embedding_feature(x, embedding_table, x_index=None):
    """Pure-JAX reference mirroring the PyTorch forward exactly."""
    *batch_shape, T = x.shape
    M, E = embedding_table.shape
    if x_index is None:
        x_index = jnp.arange(T)
    feature_embed = embedding_table[x_index]                   # (T, E)
    expand_shape = [1] * len(batch_shape) + [T, E]
    feature_embed = feature_embed.reshape(expand_shape)
    return jnp.broadcast_to(feature_embed, (*batch_shape, T, E))


if __name__ == "__main__":
    # Module config: embed_dim=32, max_embedding=100.
    embed_dim = 32
    max_embedding = 100
    batch_shape = (2, 4)
    T = 8

    key = jax.random.PRNGKey(0)
    kx, kw, ki = jax.random.split(key, 3)

    # x: only its shape matters (values unused by the forward pass).
    x = jax.random.uniform(kx, (*batch_shape, T), dtype=jnp.float32) * 150.0 - 50.0
    embedding_table = jax.random.normal(kw, (max_embedding, embed_dim),
                                        dtype=jnp.float32)

    # Case 1: default x_index = arange(T) — view-style (non-materialized) path.
    ref = _reference_embedding_feature(x, embedding_table)
    out = embedding_feature_layer(x, embedding_table)
    jax.block_until_ready(out)
    assert out.shape == (*batch_shape, T, embed_dim)
    assert jnp.allclose(out, ref, atol=1e-6, rtol=1e-6)

    # Case 1b: materialized lane-dense path.
    out_m = embedding_feature_layer(x, embedding_table, materialize_batch=True)
    jax.block_until_ready(out_m)
    assert out_m.shape == (*batch_shape, T, embed_dim)
    assert jnp.allclose(out_m, ref, atol=1e-6, rtol=1e-6)

    # Case 2: explicit (non-trivial) x_index exercises the real gather path.
    x_index = jax.random.randint(ki, (T,), 0, max_embedding)
    ref2 = _reference_embedding_feature(x, embedding_table, x_index)

    out2 = embedding_feature_layer(x, embedding_table, x_index)
    jax.block_until_ready(out2)
    assert jnp.allclose(out2, ref2, atol=1e-6, rtol=1e-6)

    out2_m = embedding_feature_layer(x, embedding_table, x_index,
                                     materialize_batch=True)
    jax.block_until_ready(out2_m)
    assert jnp.allclose(out2_m, ref2, atol=1e-6, rtol=1e-6)

    print("KERNEL_OK")
</pallas_src>

<mosaic_0001>
module attributes {stable_mosaic.version = 11 : i64} {
  func.func @_gather_kernel(%arg0: i32, %arg1: memref<8x1xi32, #tpu.memory_space<vmem>>, %arg2: memref<100x32xf32, #tpu.memory_space<vmem>>, %arg3: memref<8x32xf32, #tpu.memory_space<vmem>>) attributes {dimension_semantics = [#tpu.dimension_semantics<arbitrary>], iteration_bounds = array<i64: 1>, scalar_prefetch = 0 : i64, scratch_operands = 0 : i64, tpu.core_type = #tpu.core_type<tc>, window_params = [{pipeline_mode = #tpu.pipeline_mode<synchronous>, transform_indices = @transform_0, window_bounds = array<i64: 8, 1>}, {pipeline_mode = #tpu.pipeline_mode<synchronous>, transform_indices = @transform_1, window_bounds = array<i64: 100, 32>}, {pipeline_mode = #tpu.pipeline_mode<synchronous>, transform_indices = @transform_2, window_bounds = array<i64: 8, 32>}]} {
    %0 = tpu.iota {dimensions = array<i32: 1>} : vector<8x100xi32>
    %c0 = arith.constant 0 : index
    %c0_0 = arith.constant 0 : index
    %1 = vector.load %arg1[%c0, %c0_0] : memref<8x1xi32, #tpu.memory_space<vmem>>, vector<8x1xi32>
    %2 = vector.broadcast %1 : vector<8x1xi32> to vector<8x100xi32>
    %3 = arith.cmpi eq, %0, %2 : vector<8x100xi32>
    %4 = arith.extui %3 : vector<8x100xi1> to vector<8x100xi32>
    %5 = arith.sitofp %4 : vector<8x100xi32> to vector<8x100xf32>
    %c0_1 = arith.constant 0 : index
    %c0_2 = arith.constant 0 : index
    %6 = vector.load %arg2[%c0_1, %c0_2] : memref<100x32xf32, #tpu.memory_space<vmem>>, vector<100x32xf32>
    %cst = arith.constant dense<0.000000e+00> : vector<8x32xf32>
    %7 = tpu.matmul %5, %6, %cst {dimension_numbers = #tpu.dot_dimension_numbers<[1], [0], [0], [1], [0, 0, 1, 1], [], []>} : vector<8x100xf32>, vector<100x32xf32>, vector<8x32xf32> -> vector<8x32xf32>
    %c0_3 = arith.constant 0 : index
    %c0_4 = arith.constant 0 : index
    %8 = vector.load %arg3[%c0_3, %c0_4] : memref<8x32xf32, #tpu.memory_space<vmem>>, vector<8x32xf32>
    tpu.vector_store %arg3[%c0_3, %c0_4], %7 {strides = array<i32>} : memref<8x32xf32, #tpu.memory_space<vmem>>, vector<8x32xf32>,
    return
  }
  func.func @transform_0(%arg0: i32) -> (i32, i32) {
    %c0_i32 = arith.constant 0 : i32
    %c0_i32_0 = arith.constant 0 : i32
    %c0_i32_1 = arith.constant 0 : i32
    return %c0_i32, %c0_i32_0 : i32, i32
  }
  func.func @transform_1(%arg0: i32) -> (i32, i32) {
    %c0_i32 = arith.constant 0 : i32
    %c0_i32_0 = arith.constant 0 : i32
    %c0_i32_1 = arith.constant 0 : i32
    return %c0_i32, %c0_i32_0 : i32, i32
  }
  func.func @transform_2(%arg0: i32) -> (i32, i32) {
    %c0_i32 = arith.constant 0 : i32
    %c0_i32_0 = arith.constant 0 : i32
    %c0_i32_1 = arith.constant 0 : i32
    return %c0_i32, %c0_i32_0 : i32, i32
  }
}

</mosaic_0001>

<llo_original>
// kernel: tpu_custom_call.1
$region0: #{tpu_custom_call.1}
  #allocation0 [shape = 'u32[]', space=smem, size = 0x4, offset = 0x4, fixed_abs, tag = 'smem constant byte address 0x4 - core index']
  #allocation1 [shape = 'u32[72,128]{1,0:T(1,128)}', space=vmem, size = 0x9000, scoped, tag = 'internal scratch']
  %s0 = inlined_call_operand.vmem [shape: s32[8,1], index: 0, kind: input, shape index: {}]
  %s1 = inlined_call_operand.vmem [shape: f32[100,32], index: 1, kind: input, shape index: {}]
  %s2 = inlined_call_operand.hbm [shape: f32[8,32], index: 2, kind: output, shape index: {}]
  %s3 = sld [smem:[#allocation0]]
  $region18: #{tpu_custom_call.1} parent=0
    _
  %s5 = ssub.s32 1, %s3
  %s6 = scalar_select 0, %s5, %s3
  $region1: #{tpu_custom_call.1} parent=0
    #allocation2 [shape = 'u8[4096]{0}', space=vmem, size = 0x1000, scoped, tag = 'output window, operand 0, single buffered']
    #allocation3 [shape = 's32[1]{0}', space=sflag, size = 0x4, scoped, tag = 'scoped memory for tpu_custom_call.1']
    %7 = vsyncpa [#allocation3], 0
    // Predicated region
    $region2: #{tpu_custom_call.1} parent=1 // pred_check
      _
    $region3: #{tpu_custom_call.1} parent=1 // pred_check_branch
      %9 = sbr.rel (0) target = $region5
    $region4: #{tpu_custom_call.1} parent=1 // pred_region
      _
    $region5: #{tpu_custom_call.1} parent=1 // pred_fallthru
      _
    // Predicated region
    $region6: #{tpu_custom_call.1} parent=1 // pred_check
      _
    $region7: #{tpu_custom_call.1} parent=1 // pred_check_branch
      %11 = sbr.rel (0) target = $region9
    $region8: #{tpu_custom_call.1} parent=1 // pred_region
      _
    $region9: #{tpu_custom_call.1} parent=1 // pred_fallthru
      _
    %v12 = vlaneseq
    %v13 = vand.u32 %v12, 127
    %v14 = vld [vmem:[%s0] sm:$0xff]
    %15 = vset.pattern.permute.xlu0 0
    %16 = vperm.xlu0 %15, %v14
    %v17 = vpop.permute.xlu0 %16
    %vm18 = vcmp.eq.s32.totalorder %v13, %v17
    %v19 = vsel %vm18, 1, 0
    %v20 = vcvt.s32.f32 %v19
    %v21 = vld [vmem:[%s1] sm:$0xff]
    %v22 = vld [vmem:[%s1 + $0x8] sm:$0xff]
    %v23 = vld [vmem:[%s1 + $0x10] sm:$0xff]
    %v24 = vld [vmem:[%s1 + $0x18] sm:$0xff]
    %v25 = vld [vmem:[%s1 + $0x20] sm:$0xff]
    %v26 = vld [vmem:[%s1 + $0x28] sm:$0xff]
    %v27 = vld [vmem:[%s1 + $0x30] sm:$0xff]
    %v28 = vld [vmem:[%s1 + $0x38] sm:$0xff]
    %v29 = vld [vmem:[%s1 + $0x40] sm:$0xff]
    %v30 = vld [vmem:[%s1 + $0x48] sm:$0xff]
    %v31 = vld [vmem:[%s1 + $0x50] sm:$0xff]
    %v32 = vld [vmem:[%s1 + $0x58] sm:$0xff]
    %v33 = vld [vmem:[%s1 + $0x60] sm:$0xf]
    %vm34 = vcmask 818176
    %v36 = vsel %vm34, %v20, 0
    %vm38 = vcmask 1043456
    %v40 = vsel %vm38, %v33, 0
    %42 = vmatpush.msra.mxu0 0.0
    %43 = vmatpush.msra.mxu0 0.0
    %44 = vmatpush.msra.mxu0 0.0
    %45 = vmatpush.msra.mxu0 %v40
    %46 = vmatpush.msra.mxu0 %v32
    %47 = vmatpush.msra.mxu0 %v31
    %48 = vmatpush.msra.mxu0 %v30
    %49 = vmatpush.msra.mxu0 %v29
    %50 = vmatpush.msra.mxu0 %v28
    %51 = vmatpush.msra.mxu0 %v27
    %52 = vmatpush.msra.mxu0 %v26
    %53 = vmatpush.msra.mxu0 %v25
    %54 = vmatpush.msra.mxu0 %v24
    %55 = vmatpush.msra.mxu0 %v23
    %56 = vmatpush.msra.mxu0 %v22
    %57 = vmatpush.msra.mxu0 %v21
    %58 = vmatmul.f32.gmra.mxu0 %v36
    %v59 = vpop.f32.mrf.mxu0
    %v60 = vadd.f32 0.0, %v59
    %61 = vdwg.mxu0
    %vm62 = vcmask 261120
    %63 = vst.msk [vmem:[#allocation2] sm:$0xff] %vm62, %v60
    // Predicated region
    $region10: #{tpu_custom_call.1} parent=1 // pred_check
      _
    $region11: #{tpu_custom_call.1} parent=1 // pred_check_branch
      %65 = sbr.rel (0) target = $region13
    $region12: #{tpu_custom_call.1} parent=1 // pred_region
      %67 = vsyncadd [#allocation3], 0
      %s69 = sshll.u32 [#allocation2], 4
      %s70 = int_to_ptr.vmem [resolvable:$true] %s69
      %s71 = sshll.u32 %s2, 4
      %s72 = int_to_ptr.hbm [resolvable:$true] %s71
      %74 = dma.vmem_to_hbm [thread:$0]  %s70, 128, %s72, [#allocation3]
    $region13: #{tpu_custom_call.1} parent=1 // pred_fallthru
      _
    // Predicated region
    $region14: #{tpu_custom_call.1} parent=1 // pred_check
      _
    $region15: #{tpu_custom_call.1} parent=1 // pred_check_branch
      %76 = sbr.rel (0) target = $region17
    $region16: #{tpu_custom_call.1} parent=1 // pred_region
      %78 = dma.done [#allocation3], 128
    $region17: #{tpu_custom_call.1} parent=1 // pred_fallthru
      _
    %79 = vsyncpa [#allocation3], 1

</llo_original>
